<compile_context>
chip_gen: v7x
topology: tpu7x:2x2x1
jax: 0.10.0
libtpu: 0.0.40
codegen_flags: <defaults>
</compile_context>

<pallas_src>
import functools

import numpy as np
import jax
import jax.numpy as jnp
from jax.experimental import pallas as pl
from jax.experimental.pallas import tpu as pltpu


def _rup(v, m):
    return -(-v // m) * m


@functools.lru_cache(maxsize=None)
def _vmem_budget_bytes():
    """~75% of per-core VMEM (v7x: 64 MiB -> ~48 MiB; v5e/v6e: 128 MiB -> ~96 MiB)."""
    cap = None
    try:
        cap = int(getattr(pltpu.get_tpu_info(), "vmem_capacity_bytes"))
    except Exception:
        cap = None
    if not cap:
        try:
            kind = jax.devices()[0].device_kind.lower()
        except Exception:
            kind = ""
        cap = 128 * 1024 * 1024 if ("v5" in kind or "v6" in kind) else 64 * 1024 * 1024
    return int(cap * 3 // 4)


def _est_vmem_bytes(tile_h, Wt, K, co_tile, out_bytes):
    """Layout-padded VMEM estimate: double-buffered in/w/b/out blocks + f32 accumulator.

    Mosaic stores VMEM blocks in (16,128) bf16 / (8,128) f32 tiles, so round the trailing dim
    to 128 lanes and the second-to-last dim to the sublane tile before multiplying.
    """
    rows = tile_h * Wt
    in_rows = (tile_h + 2) * Wt
    K_l = _rup(K, 128)
    co_l = _rup(co_tile, 128)
    in_blk = _rup(in_rows, 16) * K_l * 2                    # bf16 input block
    w_blk = 3 * _rup(K, 16) * co_l * 2                      # bf16 weight block
    b_blk = 8 * co_l * 4                                    # f32 bias block
    out_sub = 8 if out_bytes == 4 else 16
    out_blk = _rup(rows, out_sub) * co_l * out_bytes        # output block
    acc = _rup(rows, 8) * co_l * 4                          # f32 accumulator (may live in VMEM)
    return 2 * (in_blk + w_blk + b_blk + out_blk) + acc


def _pick_tile_h(H, Wt, K, co_tile, out_bytes, budget):
    """Row-tile height: target ~2048 flattened rows per step, shrink to fit the VMEM budget,
    and prefer a divisor of H (no H padding / no post-call row slice) when one is close."""
    th = max(1, min(H, max(1, 2048 // Wt)))
    while th > 1 and _est_vmem_bytes(th, Wt, K, co_tile, out_bytes) > budget:
        th = max(1, th - max(1, th // 4))
    for d in range(th, max(1, th // 2) - 1, -1):
        if H % d == 0:
            return d
    return th


# ----------------------------------------------------------------------------
# Pallas kernel: fused 3x3 conv (SAME padding) + bias on width-im2col'd input
# ----------------------------------------------------------------------------
def _conv3x3_kernel(x_ref, w_ref, b_ref, o_ref, *, Wt, tile_h):
    # x_ref: (1, 1, (tile_h+2)*Wt, K)   bf16  width-im2col rows (+2-row dy halo), K = 3*Cin
    # w_ref: (3, K, co_tile)            bf16  weights, dy-major
    # b_ref: (1, co_tile)               f32   bias
    # o_ref: (1, 1, tile_h*Wt, co_tile) f32/bf16 output rows
    rows = tile_h * Wt
    cot = o_ref.shape[-1]
    acc = jnp.zeros((rows, cot), jnp.float32)
    # 3 MXU matmuls (dy taps); slice starts dy*Wt are multiples of 16 -> no realign copies.
    for dy in range(3):
        xs = x_ref[0, 0, dy * Wt:dy * Wt + rows, :]
        acc = acc + jnp.dot(xs, w_ref[dy], preferred_element_type=jnp.float32)
    o_ref[0, 0] = (acc + b_ref[...]).astype(o_ref.dtype)


@functools.lru_cache(maxsize=None)
def _make_conv_call(N, n_tiles, tile_h, Wt, K, Cout_p, co_tile, out_dtype_name, vmem_limit):
    out_dtype = jnp.dtype(out_dtype_name)
    rows = tile_h * Wt
    in_rows = (tile_h + 2) * Wt
    n_co = Cout_p // co_tile
    kernel = functools.partial(_conv3x3_kernel, Wt=Wt, tile_h=tile_h)

    flops = 2 * 3 * K * N * n_tiles * rows * Cout_p
    bytes_accessed = (N * n_tiles * in_rows * K * 2          # bf16 im2col input
                      + 3 * K * Cout_p * 2                   # bf16 weights
                      + Cout_p * 4                           # f32 bias
                      + N * n_tiles * rows * Cout_p * out_dtype.itemsize)

    return pl.pallas_call(
        kernel,
        out_shape=jax.ShapeDtypeStruct((N, n_tiles, rows, Cout_p), out_dtype),
        grid_spec=pltpu.PrefetchScalarGridSpec(
            num_scalar_prefetch=0,
            grid=(N, n_tiles, n_co),
            in_specs=[
                # input block is constant across `co` (innermost axis) -> stays VMEM-resident
                pl.BlockSpec((1, 1, in_rows, K), lambda n, r, co: (n, r, 0, 0)),
                pl.BlockSpec((3, K, co_tile), lambda n, r, co: (0, 0, co)),
                pl.BlockSpec((1, co_tile), lambda n, r, co: (0, co)),
            ],
            out_specs=pl.BlockSpec((1, 1, rows, co_tile), lambda n, r, co: (n, r, 0, co)),
        ),
        compiler_params=pltpu.CompilerParams(
            dimension_semantics=("parallel", "parallel", "parallel"),
            vmem_limit_bytes=vmem_limit,
        ),
        cost_estimate=pl.CostEstimate(flops=flops, transcendentals=0,
                                      bytes_accessed=bytes_accessed),
    )


def conv3x3_bias(x_nhwc, w_hwio, b, *, out_dtype=jnp.float32):
    """3x3 conv, stride 1, SAME padding, + bias.  (N,H,W,Cin) -> (N,H,W,Cout).

    bf16 MXU operands, f32 accumulation, f32 (default, PyTorch-like) or bf16 output.
    """
    N, H, W, Cin = map(int, x_nhwc.shape)
    Cout = int(w_hwio.shape[-1])
    K = 3 * Cin
    out_dtype = jnp.dtype(out_dtype)

    # Output-channel tiling: 128-wide tiles (K-bound matmul; 256 only wastes VMEM, esp. v7x);
    # small heads keep their true width (no lane padding of the HBM output).
    if Cout >= 128:
        co_tile = 128
        Cout_p = _rup(Cout, co_tile)
    else:
        co_tile = Cout_p = Cout
    if Cout_p != Cout:
        w_hwio = jnp.pad(w_hwio, ((0, 0), (0, 0), (0, 0), (0, Cout_p - Cout)))
        b = jnp.pad(b, (0, Cout_p - Cout))

    Wt = _rup(W, 16)                                  # bf16 sublane packing
    budget = _vmem_budget_bytes()
    tile_h = _pick_tile_h(H, Wt, K, co_tile, out_dtype.itemsize, budget)
    n_tiles = -(-H // tile_h)
    Hp = n_tiles * tile_h
    vmem_limit = int(min(budget, max(32 * 1024 * 1024,
                                     2 * _est_vmem_bytes(tile_h, Wt, K, co_tile,
                                                         out_dtype.itemsize))))

    # ---- wrapper glue: cast -> pad -> width-im2col -> per-tile halo gather (thin XLA ops) ----
    xb = x_nhwc.astype(jnp.bfloat16)                  # cast BEFORE padding (half the pad traffic)
    xp = jnp.pad(xb, ((0, 0), (1, 1 + Hp - H), (1, 1 + Wt - W), (0, 0)))   # (N, Hp+2, Wt+2, Cin)
    xw = jnp.concatenate([xp[:, :, dx:dx + Wt, :] for dx in range(3)], axis=-1)  # (N, Hp+2, Wt, K)
    row_idx = (jnp.arange(n_tiles, dtype=jnp.int32)[:, None] * tile_h
               + jnp.arange(tile_h + 2, dtype=jnp.int32)[None, :])
    xt = jnp.take(xw, row_idx, axis=1)                # (N, n_tiles, tile_h+2, Wt, K) with halo
    xt = xt.reshape(N, n_tiles, (tile_h + 2) * Wt, K)

    w2 = w_hwio.astype(jnp.bfloat16).reshape(3, K, Cout_p)   # (dy, dx*Cin+c, co)
    bias = b.astype(jnp.float32).reshape(1, Cout_p)

    call = _make_conv_call(N, n_tiles, tile_h, Wt, K, Cout_p, co_tile, out_dtype.name, vmem_limit)
    out = call(xt, w2, bias)                          # (N, n_tiles, tile_h*Wt, Cout_p)
    out = out.reshape(N, Hp, Wt, Cout_p)
    if (Hp, Wt, Cout_p) != (H, W, Cout):              # free in the aligned case; one slice otherwise
        out = out[:, :H, :W, :Cout]
    return out


# ----------------------------------------------------------------------------
# OutConv module (PyTorch-equivalent forward), NCHW at the boundary
# ----------------------------------------------------------------------------
class OutConv:
    """Pallas-TPU equivalent of nn.Conv2d(in_channels, out_channels, 3, padding=1)."""

    def __init__(self, key, in_channels, out_channels):
        kw, kb = jax.random.split(key)
        fan_in = 9 * in_channels
        bound = 1.0 / np.sqrt(fan_in)                 # PyTorch default Conv2d init bounds
        self.w = jax.random.uniform(kw, (3, 3, in_channels, out_channels),
                                    jnp.float32, -bound, bound)
        self.b = jax.random.uniform(kb, (out_channels,), jnp.float32, -bound, bound)

    def __call__(self, x_nchw):
        x = jnp.transpose(x_nchw, (0, 2, 3, 1))
        y = conv3x3_bias(x, self.w, self.b)
        return jnp.transpose(y, (0, 3, 1, 2))


def outconv_heads_fused(x_nchw, heads):
    """Apply many OutConv heads to the SAME input in one pallas_call (tail batching):
    weights/biases concatenated along Cout so the input is im2col'd / DMA'd once."""
    w_cat = jnp.concatenate([h.w for h in heads], axis=-1)
    b_cat = jnp.concatenate([h.b for h in heads], axis=-1)
    x = jnp.transpose(x_nchw, (0, 2, 3, 1))
    y = conv3x3_bias(x, w_cat, b_cat)
    return jnp.transpose(y, (0, 3, 1, 2))             # (N, sum(Cout_i), H, W)


# ----------------------------------------------------------------------------
# Pure-JAX reference (same bf16 operand rounding, f32 accumulation)
# ----------------------------------------------------------------------------
def outconv_ref(x_nchw, w_hwio, b):
    xb = x_nchw.astype(jnp.bfloat16).astype(jnp.float32)
    wb = w_hwio.astype(jnp.bfloat16).astype(jnp.float32)
    y = jax.lax.conv_general_dilated(
        xb, wb, window_strides=(1, 1), padding="SAME",
        dimension_numbers=("NCHW", "HWIO", "NCHW"))
    return y + b.reshape(1, -1, 1, 1)


if __name__ == "__main__":
    key = jax.random.PRNGKey(0)
    kx, k1, k2, k3, kx2 = jax.random.split(key, 5)

    # Small shapes consistent with the module: N=2, Cin=4, H=W=16
    x = jax.random.normal(kx, (2, 4, 16, 16), jnp.float32)

    # 1) Single small head (lane-true output, single co tile)
    m_small = OutConv(k1, 4, 8)
    y_small = jax.block_until_ready(m_small(x))
    assert y_small.shape == (2, 8, 16, 16), y_small.shape
    np.testing.assert_allclose(np.asarray(y_small),
                               np.asarray(outconv_ref(x, m_small.w, m_small.b)),
                               rtol=2e-2, atol=2e-2)

    # 2) Many small heads fused into ONE pallas_call (tail batching)
    heads = [OutConv(k, 4, 3) for k in jax.random.split(k2, 4)]
    y_fused = jax.block_until_ready(outconv_heads_fused(x, heads))
    assert y_fused.shape == (2, 12, 16, 16), y_fused.shape
    y_fused_ref = jnp.concatenate([outconv_ref(x, h.w, h.b) for h in heads], axis=1)
    np.testing.assert_allclose(np.asarray(y_fused), np.asarray(y_fused_ref),
                               rtol=2e-2, atol=2e-2)

    # 3) Wide head exercising the 128-wide co-tiled grid path
    m_wide = OutConv(k3, 4, 256)
    y_wide = jax.block_until_ready(m_wide(x))
    assert y_wide.shape == (2, 256, 16, 16), y_wide.shape
    np.testing.assert_allclose(np.asarray(y_wide),
                               np.asarray(outconv_ref(x, m_wide.w, m_wide.b)),
                               rtol=2e-2, atol=2e-2)

    # 4) Unaligned spatial shape: exercises Wt/Hp padding + the post-call slice path
    x_odd = jax.random.normal(kx2, (1, 4, 10, 12), jnp.float32)
    y_odd = jax.block_until_ready(m_small(x_odd))
    assert y_odd.shape == (1, 8, 10, 12), y_odd.shape
    np.testing.assert_allclose(np.asarray(y_odd),
                               np.asarray(outconv_ref(x_odd, m_small.w, m_small.b)),
                               rtol=2e-2, atol=2e-2)

    for y in (y_small, y_fused, y_wide, y_odd):
        assert bool(jnp.all(jnp.isfinite(y)))
    print("KERNEL_OK")
</pallas_src>

<mosaic_0001>
module attributes {stable_mosaic.version = 11 : i64} {
  func.func @_conv3x3_kernel(%arg0: i32, %arg1: i32, %arg2: i32, %arg3: memref<1x1x288x12xbf16, #tpu.memory_space<vmem>>, %arg4: memref<3x12x8xbf16, #tpu.memory_space<vmem>>, %arg5: memref<1x8xf32, #tpu.memory_space<vmem>>, %arg6: memref<1x1x256x8xf32, #tpu.memory_space<vmem>>) attributes {dimension_semantics = [#tpu.dimension_semantics<parallel>, #tpu.dimension_semantics<parallel>, #tpu.dimension_semantics<parallel>], iteration_bounds = array<i64: 2, 1, 1>, scalar_prefetch = 0 : i64, scratch_operands = 0 : i64, tpu.core_type = #tpu.core_type<tc>, window_params = [{transform_indices = @transform_0, window_bounds = array<i64: 1, 1, 288, 12>}, {transform_indices = @transform_1, window_bounds = array<i64: 3, 12, 8>}, {transform_indices = @transform_2, window_bounds = array<i64: 1, 8>}, {transform_indices = @transform_3, window_bounds = array<i64: 1, 1, 256, 8>}]} {
    %cst = arith.constant 0.000000e+00 : f32
    %0 = vector.broadcast %cst : f32 to vector<256x8xf32>
    %c0 = arith.constant 0 : index
    %c0_0 = arith.constant 0 : index
    %c0_1 = arith.constant 0 : index
    %c0_2 = arith.constant 0 : index
    %1 = vector.load %arg3[%c0, %c0_0, %c0_1, %c0_2] : memref<1x1x288x12xbf16, #tpu.memory_space<vmem>>, vector<1x1x256x12xbf16>
    %2 = vector.shape_cast %1 : vector<1x1x256x12xbf16> to vector<256x12xbf16>
    %c0_3 = arith.constant 0 : index
    %c0_4 = arith.constant 0 : index
    %c0_5 = arith.constant 0 : index
    %3 = vector.load %arg4[%c0_3, %c0_4, %c0_5] : memref<3x12x8xbf16, #tpu.memory_space<vmem>>, vector<1x12x8xbf16>
    %4 = vector.shape_cast %3 : vector<1x12x8xbf16> to vector<12x8xbf16>
    %cst_6 = arith.constant dense<0.000000e+00> : vector<256x8xf32>
    %5 = tpu.matmul %2, %4, %cst_6 {dimension_numbers = #tpu.dot_dimension_numbers<[1], [0], [0], [1], [0, 0, 1, 1], [], []>} : vector<256x12xbf16>, vector<12x8xbf16>, vector<256x8xf32> -> vector<256x8xf32>
    %6 = arith.addf %0, %5 : vector<256x8xf32>
    %c0_7 = arith.constant 0 : index
    %c0_8 = arith.constant 0 : index
    %c16 = arith.constant 16 : index
    %c0_9 = arith.constant 0 : index
    %7 = vector.load %arg3[%c0_7, %c0_8, %c16, %c0_9] : memref<1x1x288x12xbf16, #tpu.memory_space<vmem>>, vector<1x1x256x12xbf16>
    %8 = vector.shape_cast %7 : vector<1x1x256x12xbf16> to vector<256x12xbf16>
    %c1 = arith.constant 1 : index
    %c0_10 = arith.constant 0 : index
    %c0_11 = arith.constant 0 : index
    %9 = vector.load %arg4[%c1, %c0_10, %c0_11] : memref<3x12x8xbf16, #tpu.memory_space<vmem>>, vector<1x12x8xbf16>
    %10 = vector.shape_cast %9 : vector<1x12x8xbf16> to vector<12x8xbf16>
    %cst_12 = arith.constant dense<0.000000e+00> : vector<256x8xf32>
    %11 = tpu.matmul %8, %10, %cst_12 {dimension_numbers = #tpu.dot_dimension_numbers<[1], [0], [0], [1], [0, 0, 1, 1], [], []>} : vector<256x12xbf16>, vector<12x8xbf16>, vector<256x8xf32> -> vector<256x8xf32>
    %12 = arith.addf %6, %11 : vector<256x8xf32>
    %c0_13 = arith.constant 0 : index
    %c0_14 = arith.constant 0 : index
    %c32 = arith.constant 32 : index
    %c0_15 = arith.constant 0 : index
    %13 = vector.load %arg3[%c0_13, %c0_14, %c32, %c0_15] : memref<1x1x288x12xbf16, #tpu.memory_space<vmem>>, vector<1x1x256x12xbf16>
    %14 = vector.shape_cast %13 : vector<1x1x256x12xbf16> to vector<256x12xbf16>
    %c2 = arith.constant 2 : index
    %c0_16 = arith.constant 0 : index
    %c0_17 = arith.constant 0 : index
    %15 = vector.load %arg4[%c2, %c0_16, %c0_17] : memref<3x12x8xbf16, #tpu.memory_space<vmem>>, vector<1x12x8xbf16>
    %16 = vector.shape_cast %15 : vector<1x12x8xbf16> to vector<12x8xbf16>
    %cst_18 = arith.constant dense<0.000000e+00> : vector<256x8xf32>
    %17 = tpu.matmul %14, %16, %cst_18 {dimension_numbers = #tpu.dot_dimension_numbers<[1], [0], [0], [1], [0, 0, 1, 1], [], []>} : vector<256x12xbf16>, vector<12x8xbf16>, vector<256x8xf32> -> vector<256x8xf32>
    %18 = arith.addf %12, %17 : vector<256x8xf32>
    %c0_19 = arith.constant 0 : index
    %c0_20 = arith.constant 0 : index
    %19 = vector.load %arg5[%c0_19, %c0_20] : memref<1x8xf32, #tpu.memory_space<vmem>>, vector<1x8xf32>
    %20 = vector.broadcast %19 : vector<1x8xf32> to vector<256x8xf32>
    %21 = arith.addf %18, %20 : vector<256x8xf32>
    %c0_21 = arith.constant 0 : index
    %c0_22 = arith.constant 0 : index
    %c0_23 = arith.constant 0 : index
    %c0_24 = arith.constant 0 : index
    %22 = vector.load %arg6[%c0_21, %c0_22, %c0_23, %c0_24] : memref<1x1x256x8xf32, #tpu.memory_space<vmem>>, vector<1x1x256x8xf32>
    %23 = vector.shape_cast %22 : vector<1x1x256x8xf32> to vector<256x8xf32>
    %24 = vector.shape_cast %21 : vector<256x8xf32> to vector<1x1x256x8xf32>
    tpu.vector_store %arg6[%c0_21, %c0_22, %c0_23, %c0_24], %24 {strides = array<i32>} : memref<1x1x256x8xf32, #tpu.memory_space<vmem>>, vector<1x1x256x8xf32>,
    return
  }
  func.func @transform_0(%arg0: i32, %arg1: i32, %arg2: i32) -> (i32, i32, i32, i32) {
    %c0_i32 = arith.constant 0 : i32
    %c0_i32_0 = arith.constant 0 : i32
    %c0_i32_1 = arith.constant 0 : i32
    return %arg0, %arg1, %c0_i32, %c0_i32_0 : i32, i32, i32, i32
  }
  func.func @transform_1(%arg0: i32, %arg1: i32, %arg2: i32) -> (i32, i32, i32) {
    %c0_i32 = arith.constant 0 : i32
    %c0_i32_0 = arith.constant 0 : i32
    %c0_i32_1 = arith.constant 0 : i32
    return %c0_i32, %c0_i32_0, %arg2 : i32, i32, i32
  }
  func.func @transform_2(%arg0: i32, %arg1: i32, %arg2: i32) -> (i32, i32) {
    %c0_i32 = arith.constant 0 : i32
    %c0_i32_0 = arith.constant 0 : i32
    return %c0_i32, %arg2 : i32, i32
  }
  func.func @transform_3(%arg0: i32, %arg1: i32, %arg2: i32) -> (i32, i32, i32, i32) {
    %c0_i32 = arith.constant 0 : i32
    %c0_i32_0 = arith.constant 0 : i32
    return %arg0, %arg1, %c0_i32, %arg2 : i32, i32, i32, i32
  }
}

</mosaic_0001>

<llo_original>
// kernel: tpu_custom_call.1
$region0: #{tpu_custom_call.1}
  #allocation0 [shape = 'u32[]', space=smem, size = 0x4, offset = 0x4, fixed_abs, tag = 'smem constant byte address 0x4 - core index']
  #allocation1 [shape = 'u32[144,128]{1,0:T(1,128)}', space=vmem, size = 0x12000, scoped, tag = 'internal scratch']
  %s0 = inlined_call_operand.vmem [shape: bf16[2,1,288,12], index: 0, kind: input, shape index: {}]
  %s1 = inlined_call_operand.vmem [shape: bf16[3,12,8], index: 1, kind: input, shape index: {}]
  %s2 = inlined_call_operand.vmem [shape: f32[1,8], index: 2, kind: input, shape index: {}]
  %s3 = inlined_call_operand.vmem [shape: f32[2,1,256,8], index: 3, kind: output, shape index: {}]
  %s4 = sld [smem:[#allocation0]]
  $region45: #{tpu_custom_call.1} parent=0
    _
  %s6 = ssub.s32 1, %s4
  %s7 = scalar_select 0, %s6, %s4
  loop: start=0, step=1, limit=4
  $region2: #{tpu_custom_call.1} parent=0 // loop_pre_header
    _
  $region3: #{tpu_custom_call.1} parent=0 // loop_header
    %s9 = sphi 0, %s13
    %p10 = scmp.ge.s32.totalorder %s9, 4
    %s16 = sphi 0, %s35
    %s17 = sphi 0, %s31
    %s18 = sphi 0, %s27
    %s19 = sphi 0, %s16
    %s20 = sphi 0, %s17
    %s21 = sphi 0, %s18
    %s22 = sphi 0, %s19
    %s23 = sphi 0, %s20
    %s24 = sphi 0, %s21
    %s40 = sphi 0, %s42
    %s43 = sphi 0, %s40
    %s44 = sphi 0, %s43
    %s60 = sphi 0, %s44
    %s66 = sphi 0, %s68
    %s69 = sphi 0, %s66
    %s70 = sphi 0, %s69
    %s86 = sphi 0, %s70
    %s92 = sphi 0, %s94
    %s95 = sphi 0, %s92
    %s96 = sphi 0, %s95
    %s112 = sphi 0, %s96
    %s122 = sphi 0, %s124
    %s125 = sphi 0, %s122
    %s126 = sphi 0, %s125
    %s142 = sphi 0, %s126
  $region4: #{tpu_custom_call.1} parent=0 // loop_header_branch
    %12 = sbr.rel (%p10) target = $region8
  $region5: #{tpu_custom_call.1} parent=0 // loop_body
    %s14 = ssub.s32 %s9, 1
    %s15 = ssub.s32 %s9, 2
    %s25 = sadd.s32 1, %s18
    %p26 = scmp.ge.s32.totalorder %s25, 1
    %s27 = scalar_select %p26, 0, %s25
    %s28 = sadd.s32 1, %s17
    %s29 = scalar_select %p26, %s28, %s17
    %p30 = scmp.ge.s32.totalorder %s29, 1
    %s31 = scalar_select %p30, 0, %s29
    %s32 = sadd.s32 1, %s16
    %s33 = scalar_select %p30, %s32, %s16
    %p34 = scmp.ge.s32.totalorder %s33, 2
    %s35 = scalar_select %p34, 0, %s33
    %s36 = ssub.s32 %s16, %s35
    %s37 = ssub.s32 %s17, %s31
    %s38 = sor.u32 %s36, %s37
    %p39 = scmp.eq.s32.totalorder %s38, 0
    %s41 = sadd.s32 %s40, 1
    %s42 = scalar_select %p39, %s40, %s41
    %p45 = pneg %p39
    %p46 = scmp.eq.s32.totalorder %s9, 1
    %p47 = por %p45, %p46
    %p48 = scmp.ne.s32.totalorder %s40, %s43
    %p49 = scmp.eq.s32.totalorder %s9, 0
    %p50 = por %p48, %p49
    %p51 = scmp.ne.s32.totalorder %s40, %s43
    %p52 = scmp.eq.s32.totalorder %s14, 1
    %p53 = por %p51, %p52
    %p54 = scmp.ne.s32.totalorder %s43, %s44
    %p55 = scmp.eq.s32.totalorder %s14, 0
    %p56 = por %p54, %p55
    %p57 = scmp.ne.s32.totalorder %s43, %s44
    %p58 = scmp.eq.s32.totalorder %s15, 1
    %p59 = por %p57, %p58
    %p61 = scmp.ne.s32.totalorder %s44, %s60
    %p62 = scmp.eq.s32.totalorder %s15, 0
    %p63 = por %p61, %p62
    %s64 = ssub.s32 %s18, %s27
    %p65 = scmp.eq.s32.totalorder %s64, 0
    %s67 = sadd.s32 %s66, 1
    %s68 = scalar_select %p65, %s66, %s67
    %p71 = pneg %p65
    %p72 = scmp.eq.s32.totalorder %s9, 1
    %p73 = por %p71, %p72
    %p74 = scmp.ne.s32.totalorder %s66, %s69
    %p75 = scmp.eq.s32.totalorder %s9, 0
    %p76 = por %p74, %p75
    %p77 = scmp.ne.s32.totalorder %s66, %s69
    %p78 = scmp.eq.s32.totalorder %s14, 1
    %p79 = por %p77, %p78
    %p80 = scmp.ne.s32.totalorder %s69, %s70
    %p81 = scmp.eq.s32.totalorder %s14, 0
    %p82 = por %p80, %p81
    %p83 = scmp.ne.s32.totalorder %s69, %s70
    %p84 = scmp.eq.s32.totalorder %s15, 1
    %p85 = por %p83, %p84
    %p87 = scmp.ne.s32.totalorder %s70, %s86
    %p88 = scmp.eq.s32.totalorder %s15, 0
    %p89 = por %p87, %p88
    %s90 = ssub.s32 %s18, %s27
    %p91 = scmp.eq.s32.totalorder %s90, 0
    %s93 = sadd.s32 %s92, 1
    %s94 = scalar_select %p91, %s92, %s93
    %p97 = pneg %p91
    %p98 = scmp.eq.s32.totalorder %s9, 1
    %p99 = por %p97, %p98
    %p100 = scmp.ne.s32.totalorder %s92, %s95
    %p101 = scmp.eq.s32.totalorder %s9, 0
    %p102 = por %p100, %p101
    %p103 = scmp.ne.s32.totalorder %s92, %s95
    %p104 = scmp.eq.s32.totalorder %s14, 1
    %p105 = por %p103, %p104
    %p106 = scmp.ne.s32.totalorder %s95, %s96
    %p107 = scmp.eq.s32.totalorder %s14, 0
    %p108 = por %p106, %p107
    %p109 = scmp.ne.s32.totalorder %s95, %s96
    %p110 = scmp.eq.s32.totalorder %s15, 1
    %p111 = por %p109, %p110
    %p113 = scmp.ne.s32.totalorder %s96, %s112
    %p114 = scmp.eq.s32.totalorder %s15, 0
    %p115 = por %p113, %p114
    %s116 = ssub.s32 %s16, %s35
    %s117 = ssub.s32 %s17, %s31
    %s118 = sor.u32 %s116, %s117
    %s119 = ssub.s32 %s18, %s27
    %s120 = sor.u32 %s118, %s119
    %p121 = scmp.eq.s32.totalorder %s120, 0
    %s123 = sadd.s32 %s122, 1
    %s124 = scalar_select %p121, %s122, %s123
    %p127 = pneg %p121
    %p128 = scmp.eq.s32.totalorder %s9, 1
    %p129 = por %p127, %p128
    %p130 = scmp.ne.s32.totalorder %s122, %s125
    %p131 = scmp.eq.s32.totalorder %s9, 0
    %p132 = por %p130, %p131
    %p133 = scmp.ne.s32.totalorder %s122, %s125
    %p134 = scmp.eq.s32.totalorder %s14, 1
    %p135 = por %p133, %p134
    %p136 = scmp.ne.s32.totalorder %s125, %s126
    %p137 = scmp.eq.s32.totalorder %s14, 0
    %p138 = por %p136, %p137
    %p139 = scmp.ne.s32.totalorder %s125, %s126
    %p140 = scmp.eq.s32.totalorder %s15, 1
    %p141 = por %p139, %p140
    %p143 = scmp.ne.s32.totalorder %s126, %s142
    %p144 = scmp.eq.s32.totalorder %s15, 0
    %p145 = por %p143, %p144
    %p146 = scmp.le.s32.totalorder 1, %s9
    %p147 = scmp.lt.s32.totalorder %s9, 3
    %p148 = pnand %p146, %p147
    %p149 = pneg %p148
    // Predicated region
    $region9: #{tpu_custom_call.1} parent=5 // pred_check
      _
    $region10: #{tpu_custom_call.1} parent=5 // pred_check_branch
      %151 = sbr.rel (%p148) target = $region12
    $region11: #{tpu_custom_call.1} parent=5 // pred_region
      %s152 = ssub.s32 %s9, 1
      // Predicated region
      $region13: #{tpu_custom_call.1} parent=11 // pred_check
        %p153 = pneg %p82
      $region14: #{tpu_custom_call.1} parent=11 // pred_check_branch
        %155 = sbr.rel (%p153) target = $region16
      $region15: #{tpu_custom_call.1} parent=11 // pred_region
        %p156 = scmp.lt.s32.totalorder %s21, 0
        %s157 = scalar_select %p156, %s21, 0
        %s158 = smul.addr %s157, 4
        %s159 = scalar_lea.vmem %s1, %s158
      $region16: #{tpu_custom_call.1} parent=11 // pred_fallthru
        _
      // Predicated region
      $region17: #{tpu_custom_call.1} parent=11 // pred_check
        %p160 = pneg %p108
      $region18: #{tpu_custom_call.1} parent=11 // pred_check_branch
        %162 = sbr.rel (%p160) target = $region20
      $region19: #{tpu_custom_call.1} parent=11 // pred_region
        %p163 = scmp.lt.s32.totalorder %s21, 0
        %s164 = scalar_select %p163, %s21, 0
        %s165 = scalar_lea.vmem %s2, %s164
      $region20: #{tpu_custom_call.1} parent=11 // pred_fallthru
        _
    $region12: #{tpu_custom_call.1} parent=5 // pred_fallthru
      _
    %p166 = scmp.lt.s32.totalorder %s9, 2
    // Predicated region
    $region21: #{tpu_custom_call.1} parent=5 // pred_check
      %p167 = pneg %p166
    $region22: #{tpu_custom_call.1} parent=5 // pred_check_branch
      %169 = sbr.rel (%p167) target = $region24
    $region23: #{tpu_custom_call.1} parent=5 // pred_region
      // Predicated region
      $region25: #{tpu_custom_call.1} parent=23 // pred_check
        %p170 = pneg %p50
      $region26: #{tpu_custom_call.1} parent=23 // pred_check_branch
        %172 = sbr.rel (%p170) target = $region28
      $region27: #{tpu_custom_call.1} parent=23 // pred_region
        %p173 = scmp.lt.s32.totalorder %s16, 1
        %s174 = scalar_select %p173, %s16, 1
        %p175 = scmp.lt.s32.totalorder %s17, 0
        %s176 = scalar_select %p175, %s17, 0
        %s177 = smul.addr %s176, 36
        %s178 = smul.addr %s174, 36
        %s179 = sadd.s32 %s177, %s178
        %s180 = smul.addr %s179, 4
        %s181 = scalar_lea.vmem %s0, %s180
      $region28: #{tpu_custom_call.1} parent=23 // pred_fallthru
        _
    $region24: #{tpu_custom_call.1} parent=5 // pred_fallthru
      _
    %p182 = scmp.le.s32.totalorder 1, %s9
    %p183 = scmp.lt.s32.totalorder %s9, 3
    %p184 = pnand %p182, %p183
    %p185 = pneg %p184
    // Predicated region
    $region29: #{tpu_custom_call.1} parent=5 // pred_check
      _
    $region30: #{tpu_custom_call.1} parent=5 // pred_check_branch
      %187 = sbr.rel (%p184) target = $region32
    $region31: #{tpu_custom_call.1} parent=5 // pred_region
      %s188 = ssub.s32 %s9, 1
      %p189 = scmp.lt.s32.totalorder %s19, 1
      %s190 = scalar_select %p189, %s19, 1
      %p191 = scmp.lt.s32.totalorder %s20, 0
      %s192 = scalar_select %p191, %s20, 0
      %s193 = smul.addr %s192, 36
      %s194 = smul.addr %s190, 36
      %s195 = sadd.s32 %s193, %s194
      %s196 = smul.addr %s195, 4
      %s197 = scalar_lea.vmem %s0, %s196
      %p198 = pneg %p56
      %p199 = pneg %p53
      %p200 = scmp.lt.s32.totalorder %s21, 0
      %s201 = scalar_select %p200, %s21, 0
      %s202 = smul.addr %s201, 4
      %s203 = scalar_lea.vmem %s1, %s202
      %p204 = pneg %p82
      %p205 = pneg %p79
      %p206 = scmp.lt.s32.totalorder %s21, 0
      %s207 = scalar_select %p206, %s21, 0
      %s208 = scalar_lea.vmem %s2, %s207
      %p209 = pneg %p108
      %p210 = pneg %p105
      %p211 = pneg %p138
      %p212 = pneg %p135
      %p213 = scmp.lt.s32.totalorder %s19, 1
      %s214 = scalar_select %p213, %s19, 1
      %p215 = scmp.lt.s32.totalorder %s20, 0
      %s216 = scalar_select %p215, %s20, 0
      %p217 = scmp.lt.s32.totalorder %s21, 0
      %s218 = scalar_select %p217, %s21, 0
      %s219 = smul.addr %s216, 32
      %s220 = sadd.s32 %s218, %s219
      %s221 = smul.addr %s214, 32
      %s222 = sadd.s32 %s220, %s221
      %s223 = smul.addr %s222, 8
      %s224 = scalar_lea.vmem %s3, %s223
      %p225 = scmp.lt.s32.totalorder %s19, 1
      %s226 = scalar_select %p225, %s19, 1
      %p227 = scmp.lt.s32.totalorder %s20, 0
      %s228 = scalar_select %p227, %s20, 0
      %s229 = smul.addr %s228, 36
      %s230 = smul.addr %s226, 36
      %s231 = sadd.s32 %s229, %s230
      %s232 = smul.addr %s231, 4
      %s233 = scalar_lea.vmem %s0, %s232
      %p234 = scmp.lt.s32.totalorder %s21, 0
      %s235 = scalar_select %p234, %s21, 0
      %s236 = smul.addr %s235, 4
      %s237 = scalar_lea.vmem %s1, %s236
      %p238 = scmp.lt.s32.totalorder %s21, 0
      %s239 = scalar_select %p238, %s21, 0
      %s240 = scalar_lea.vmem %s2, %s239
      %p241 = scmp.lt.s32.totalorder %s19, 1
      %s242 = scalar_select %p241, %s19, 1
      %p243 = scmp.lt.s32.totalorder %s20, 0
      %s244 = scalar_select %p243, %s20, 0
      %p245 = scmp.lt.s32.totalorder %s21, 0
      %s246 = scalar_select %p245, %s21, 0
      %s247 = smul.addr %s244, 32
      %s248 = sadd.s32 %s246, %s247
      %s249 = smul.addr %s242, 32
      %s250 = sadd.s32 %s248, %s249
      %s251 = smul.addr %s250, 8
      %s252 = scalar_lea.vmem %s3, %s251
      %v254 = vld [vmem:[%s233] sm:$0xf]
      %v255 = vld [vmem:[%s233 + $0x4] sm:$0xf]
      %v256 = vld [vmem:[%s233 + $0x8] sm:$0xf]
      %v257 = vld [vmem:[%s233 + $0xc] sm:$0xf]
      %v258 = vld [vmem:[%s233 + $0x10] sm:$0xf]
      %v259 = vld [vmem:[%s233 + $0x14] sm:$0xf]
      %v260 = vld [vmem:[%s233 + $0x18] sm:$0xf]
      %v261 = vld [vmem:[%s233 + $0x1c] sm:$0xf]
      %v262 = vld [vmem:[%s233 + $0x20] sm:$0xf]
      %v263 = vld [vmem:[%s233 + $0x24] sm:$0xf]
      %v264 = vld [vmem:[%s233 + $0x28] sm:$0xf]
      %v265 = vld [vmem:[%s233 + $0x2c] sm:$0xf]
      %v266 = vld [vmem:[%s233 + $0x30] sm:$0xf]
      %v267 = vld [vmem:[%s233 + $0x34] sm:$0xf]
      %v268 = vld [vmem:[%s233 + $0x38] sm:$0xf]
      %v269 = vld [vmem:[%s233 + $0x3c] sm:$0xf]
      %v270 = vld [vmem:[%s233 + $0x40] sm:$0xf]
      %v271 = vld [vmem:[%s233 + $0x44] sm:$0xf]
      %v272 = vld [vmem:[%s233 + $0x48] sm:$0xf]
      %v273 = vld [vmem:[%s233 + $0x4c] sm:$0xf]
      %v274 = vld [vmem:[%s233 + $0x50] sm:$0xf]
      %v275 = vld [vmem:[%s233 + $0x54] sm:$0xf]
      %v276 = vld [vmem:[%s233 + $0x58] sm:$0xf]
      %v277 = vld [vmem:[%s233 + $0x5c] sm:$0xf]
      %v278 = vld [vmem:[%s233 + $0x60] sm:$0xf]
      %v279 = vld [vmem:[%s233 + $0x64] sm:$0xf]
      %v280 = vld [vmem:[%s233 + $0x68] sm:$0xf]
      %v281 = vld [vmem:[%s233 + $0x6c] sm:$0xf]
      %v282 = vld [vmem:[%s233 + $0x70] sm:$0xf]
      %v283 = vld [vmem:[%s233 + $0x74] sm:$0xf]
      %v284 = vld [vmem:[%s233 + $0x78] sm:$0xf]
      %v285 = vld [vmem:[%s233 + $0x7c] sm:$0xf]
      %v286 = vld [vmem:[%s237] sm:$0xf]
      %v287 = vld [vmem:[%s237 + $0x4] sm:$0x3]
      %v288 = vld [vmem:[%s233 + $0x80] sm:$0xf]
      %v289 = vld [vmem:[%s233 + $0x84] sm:$0xf]
      %s290 = scalar_lea.vmem %s237, 8
      %v291 = vld [vmem:[%s290] sm:$0xf]
      %v292 = vld [vmem:[%s290 + $0x4] sm:$0x3]
      %v325 = vunpack.c.l.b16 %v256
      %v326 = vunpack.c.l.b16 %v257
      %v327 = vunpack.c.l.b16 %v258
      %v328 = vunpack.c.l.b16 %v259
      %v329 = vunpack.c.l.b16 %v260
      %v330 = vunpack.c.l.b16 %v261
      %v331 = vunpack.c.l.b16 %v262
      %v332 = vunpack.c.l.b16 %v263
      %v333 = vunpack.c.l.b16 %v264
      %v334 = vunpack.c.l.b16 %v265
      %v335 = vunpack.c.l.b16 %v266
      %v336 = vunpack.c.l.b16 %v267
      %v337 = vunpack.c.l.b16 %v268
      %v338 = vunpack.c.l.b16 %v269
      %v339 = vunpack.c.l.b16 %v270
      %v340 = vunpack.c.l.b16 %v271
      %v341 = vunpack.c.l.b16 %v272
      %v342 = vunpack.c.l.b16 %v273
      %v343 = vunpack.c.l.b16 %v274
      %v344 = vunpack.c.l.b16 %v275
      %v345 = vunpack.c.l.b16 %v276
      %v346 = vunpack.c.l.b16 %v277
      %v347 = vunpack.c.l.b16 %v278
      %v348 = vunpack.c.l.b16 %v279
      %v349 = vunpack.c.l.b16 %v280
      %v350 = vunpack.c.l.b16 %v281
      %v351 = vunpack.c.l.b16 %v282
      %v352 = vunpack.c.l.b16 %v283
      %v353 = vunpack.c.l.b16 %v284
      %v354 = vunpack.c.l.b16 %v285
      %v355 = vunpack.c.l.b16 %v288
      %v356 = vunpack.c.l.b16 %v289
      %v357 = vpack.c.b16 %v326, %v325
      %v358 = vpack.c.b16 %v328, %v327
      %v359 = vpack.c.b16 %v330, %v329
      %v360 = vpack.c.b16 %v332, %v331
      %v361 = vpack.c.b16 %v334, %v333
      %v362 = vpack.c.b16 %v336, %v335
      %v363 = vpack.c.b16 %v338, %v337
      %v364 = vpack.c.b16 %v340, %v339
      %v365 = vpack.c.b16 %v342, %v341
      %v366 = vpack.c.b16 %v344, %v343
      %v367 = vpack.c.b16 %v346, %v345
      %v368 = vpack.c.b16 %v348, %v347
      %v369 = vpack.c.b16 %v350, %v349
      %v370 = vpack.c.b16 %v352, %v351
      %v371 = vpack.c.b16 %v354, %v353
      %v372 = vpack.c.b16 %v356, %v355
      %v375 = vunpack.c.l.b16 %v291
      %v376 = vunpack.c.l.b16 %v292
      %v377 = vpack.c.b16 %v376, %v375
      %vm378 = vcmask 97280
      %v380 = vsel %vm378, %v357, 0
      %v383 = vsel %vm378, %v358, 0
      %v386 = vsel %vm378, %v359, 0
      %v389 = vsel %vm378, %v360, 0
      %v392 = vsel %vm378, %v361, 0
      %v395 = vsel %vm378, %v362, 0
      %v398 = vsel %vm378, %v363, 0
      %v401 = vsel %vm378, %v364, 0
      %v404 = vsel %vm378, %v365, 0
      %v407 = vsel %vm378, %v366, 0
      %v410 = vsel %vm378, %v367, 0
      %v413 = vsel %vm378, %v368, 0
      %v416 = vsel %vm378, %v369, 0
      %v419 = vsel %vm378, %v370, 0
      %v422 = vsel %vm378, %v371, 0
      %v425 = vsel %vm378, %v372, 0
      %vm427 = vcmask 1045504
      %v429 = vsel %vm427, %v377, 0
      %431 = vmatprep.subr.bf16.mxu0 0
      %432 = vmatpush1.bf16.msra.mxu0 %v429
      %433 = vmatprep.subr.bf16.mxu0 0
      %434 = vmatpush1.bf16.msra.mxu0 0
      %435 = vmatprep.subr.bf16.mxu0 0
      %436 = vmatpush1.bf16.msra.mxu0 0
      %437 = vmatprep.subr.bf16.mxu0 0
      %438 = vmatpush1.bf16.msra.mxu0 0
      %439 = vmatprep.subr.bf16.mxu0 0
      %440 = vmatpush1.bf16.msra.mxu0 0
      %441 = vmatprep.subr.bf16.mxu0 0
      %442 = vmatpush1.bf16.msra.mxu0 0
      %443 = vmatprep.subr.bf16.mxu0 0
      %444 = vmatpush1.bf16.msra.mxu0 0
      %445 = vmatprep.subr.bf16.mxu0 0
      %446 = vmatpush1.bf16.msra.mxu0 0
      %447 = vmatprep.subr.bf16.mxu0 0
      %448 = vmatpush1.bf16.msra.mxu0 0
      %449 = vmatprep.subr.bf16.mxu0 0
      %450 = vmatpush1.bf16.msra.mxu0 0
      %451 = vmatprep.subr.bf16.mxu0 0
      %452 = vmatpush1.bf16.msra.mxu0 0
      %453 = vmatprep.subr.bf16.mxu0 0
      %454 = vmatpush1.bf16.msra.mxu0 0
      %455 = vmatprep.subr.bf16.mxu0 0
      %456 = vmatpush1.bf16.msra.mxu0 0
      %457 = vmatprep.subr.bf16.mxu0 0
      %458 = vmatpush1.bf16.msra.mxu0 0
      %459 = vmatprep.subr.bf16.mxu0 0
      %460 = vmatpush1.bf16.msra.mxu0 0
      %461 = vmatprep.subr.bf16.mxu0 0
      %462 = vmatpush1.bf16.msra.mxu0 0
      %463 = vmatprep.mubr.bf16.mxu0 0
      %464 = vmatmul.mubr.bf16.gmra.mrb[0].mxu0 %v380
      %v465 = vpop.f32.mrb[0].mxu0
      %v466 = vadd.f32 0.0, %v465
      %v467 = vpop.f32.mrb[0].mxu0
      %v468 = vpop.f32.mrb[0].mxu0
      %v469 = vadd.f32 0.0, %v468
      %v470 = vpop.f32.mrb[0].mxu0
      %471 = vmatprep.mubr.bf16.mxu0 0
      %472 = vmatmul.mubr.bf16.gmra.mrb[0].mxu0 %v383
      %v473 = vpop.f32.mrb[0].mxu0
      %v474 = vadd.f32 0.0, %v473
      %v475 = vpop.f32.mrb[0].mxu0
      %v476 = vpop.f32.mrb[0].mxu0
      %v477 = vadd.f32 0.0, %v476
      %v478 = vpop.f32.mrb[0].mxu0
      %479 = vmatprep.mubr.bf16.mxu0 0
      %480 = vmatmul.mubr.bf16.gmra.mrb[0].mxu0 %v386
      %v481 = vpop.f32.mrb[0].mxu0
      %v482 = vadd.f32 0.0, %v481
      %v483 = vpop.f32.mrb[0].mxu0
      %v484 = vpop.f32.mrb[0].mxu0
      %v485 = vadd.f32 0.0, %v484
      %v486 = vpop.f32.mrb[0].mxu0
      %487 = vmatprep.mubr.bf16.mxu0 0
      %488 = vmatmul.mubr.bf16.gmra.mrb[0].mxu0 %v389
      %v489 = vpop.f32.mrb[0].mxu0
      %v490 = vadd.f32 0.0, %v489
      %v491 = vpop.f32.mrb[0].mxu0
      %v492 = vpop.f32.mrb[0].mxu0
      %v493 = vadd.f32 0.0, %v492
      %v494 = vpop.f32.mrb[0].mxu0
      %495 = vmatprep.mubr.bf16.mxu0 0
      %496 = vmatmul.mubr.bf16.gmra.mrb[0].mxu0 %v392
      %v497 = vpop.f32.mrb[0].mxu0
      %v498 = vadd.f32 0.0, %v497
      %v499 = vpop.f32.mrb[0].mxu0
      %v500 = vpop.f32.mrb[0].mxu0
      %v501 = vadd.f32 0.0, %v500
      %v502 = vpop.f32.mrb[0].mxu0
      %503 = vmatprep.mubr.bf16.mxu0 0
      %504 = vmatmul.mubr.bf16.gmra.mrb[0].mxu0 %v395
      %v505 = vpop.f32.mrb[0].mxu0
      %v506 = vadd.f32 0.0, %v505
      %v507 = vpop.f32.mrb[0].mxu0
      %v508 = vpop.f32.mrb[0].mxu0
      %v509 = vadd.f32 0.0, %v508
      %v510 = vpop.f32.mrb[0].mxu0
      %511 = vmatprep.mubr.bf16.mxu0 0
      %512 = vmatmul.mubr.bf16.gmra.mrb[0].mxu0 %v398
      %v513 = vpop.f32.mrb[0].mxu0
      %v514 = vadd.f32 0.0, %v513
      %v515 = vpop.f32.mrb[0].mxu0
      %v516 = vpop.f32.mrb[0].mxu0
      %v517 = vadd.f32 0.0, %v516
      %v518 = vpop.f32.mrb[0].mxu0
      %519 = vmatprep.mubr.bf16.mxu0 0
      %520 = vmatmul.mubr.bf16.gmra.mrb[0].mxu0 %v401
      %v521 = vpop.f32.mrb[0].mxu0
      %v522 = vadd.f32 0.0, %v521
      %v523 = vpop.f32.mrb[0].mxu0
      %v524 = vpop.f32.mrb[0].mxu0
      %v525 = vadd.f32 0.0, %v524
      %v526 = vpop.f32.mrb[0].mxu0
      %527 = vmatprep.mubr.bf16.mxu0 0
      %528 = vmatmul.mubr.bf16.gmra.mrb[0].mxu0 %v404
      %v529 = vpop.f32.mrb[0].mxu0
      %v530 = vadd.f32 0.0, %v529
      %v531 = vpop.f32.mrb[0].mxu0
      %v532 = vpop.f32.mrb[0].mxu0
      %v533 = vadd.f32 0.0, %v532
      %v534 = vpop.f32.mrb[0].mxu0
      %535 = vmatprep.mubr.bf16.mxu0 0
      %536 = vmatmul.mubr.bf16.gmra.mrb[0].mxu0 %v407
      %v537 = vpop.f32.mrb[0].mxu0
      %v538 = vadd.f32 0.0, %v537
      %v539 = vpop.f32.mrb[0].mxu0
      %v540 = vpop.f32.mrb[0].mxu0
      %v541 = vadd.f32 0.0, %v540
      %v542 = vpop.f32.mrb[0].mxu0
      %543 = vmatprep.mubr.bf16.mxu0 0
      %544 = vmatmul.mubr.bf16.gmra.mrb[0].mxu0 %v410
      %v545 = vpop.f32.mrb[0].mxu0
      %v546 = vadd.f32 0.0, %v545
      %v547 = vpop.f32.mrb[0].mxu0
      %v548 = vpop.f32.mrb[0].mxu0
      %v549 = vadd.f32 0.0, %v548
      %v550 = vpop.f32.mrb[0].mxu0
      %551 = vmatprep.mubr.bf16.mxu0 0
      %552 = vmatmul.mubr.bf16.gmra.mrb[0].mxu0 %v413
      %v553 = vpop.f32.mrb[0].mxu0
      %v554 = vadd.f32 0.0, %v553
      %v555 = vpop.f32.mrb[0].mxu0
      %v556 = vpop.f32.mrb[0].mxu0
      %v557 = vadd.f32 0.0, %v556
      %v558 = vpop.f32.mrb[0].mxu0
      %559 = vmatprep.mubr.bf16.mxu0 0
      %560 = vmatmul.mubr.bf16.gmra.mrb[0].mxu0 %v416
      %v561 = vpop.f32.mrb[0].mxu0
      %v562 = vadd.f32 0.0, %v561
      %v563 = vpop.f32.mrb[0].mxu0
      %v564 = vpop.f32.mrb[0].mxu0
      %v565 = vadd.f32 0.0, %v564
      %v566 = vpop.f32.mrb[0].mxu0
      %567 = vmatprep.mubr.bf16.mxu0 0
      %568 = vmatmul.mubr.bf16.gmra.mrb[0].mxu0 %v419
      %v569 = vpop.f32.mrb[0].mxu0
      %v570 = vadd.f32 0.0, %v569
      %v571 = vpop.f32.mrb[0].mxu0
      %v572 = vpop.f32.mrb[0].mxu0
      %v573 = vadd.f32 0.0, %v572
      %v574 = vpop.f32.mrb[0].mxu0
      %575 = vmatprep.mubr.bf16.mxu0 0
      %576 = vmatmul.mubr.bf16.gmra.mrb[0].mxu0 %v422
      %v577 = vpop.f32.mrb[0].mxu0
      %v578 = vadd.f32 0.0, %v577
      %v579 = vpop.f32.mrb[0].mxu0
      %v580 = vpop.f32.mrb[0].mxu0
      %v581 = vadd.f32 0.0, %v580
      %v582 = vpop.f32.mrb[0].mxu0
      %583 = vmatprep.mubr.bf16.mxu0 0
      %584 = vmatmul.mubr.bf16.gmra.mrb[0].mxu0 %v425
      %v585 = vpop.f32.mrb[0].mxu0
      %v586 = vadd.f32 0.0, %v585
      %v587 = vpop.f32.mrb[0].mxu0
      %v588 = vpop.f32.mrb[0].mxu0
      %v589 = vadd.f32 0.0, %v588
      %v590 = vpop.f32.mrb[0].mxu0
      %591 = vdwg.mxu0
      %v594 = vunpack.c.l.b16 %v254
      %v595 = vunpack.c.l.b16 %v255
      %v596 = vpack.c.b16 %v595, %v594
      %v599 = vunpack.c.l.b16 %v286
      %v600 = vunpack.c.l.b16 %v287
      %v601 = vpack.c.b16 %v600, %v599
      %v603 = vsel %vm378, %v596, 0
      %v606 = vsel %vm427, %v601, 0
      %608 = vmatprep.subr.bf16.mxu0 0
      %609 = vmatpush1.bf16.msra.mxu0 %v606
      %610 = vmatprep.subr.bf16.mxu0 0
      %611 = vmatpush1.bf16.msra.mxu0 0
      %612 = vmatprep.subr.bf16.mxu0 0
      %613 = vmatpush1.bf16.msra.mxu0 0
      %614 = vmatprep.subr.bf16.mxu0 0
      %615 = vmatpush1.bf16.msra.mxu0 0
      %616 = vmatprep.subr.bf16.mxu0 0
      %617 = vmatpush1.bf16.msra.mxu0 0
      %618 = vmatprep.subr.bf16.mxu0 0
      %619 = vmatpush1.bf16.msra.mxu0 0
      %620 = vmatprep.subr.bf16.mxu0 0
      %621 = vmatpush1.bf16.msra.mxu0 0
      %622 = vmatprep.subr.bf16.mxu0 0
      %623 = vmatpush1.bf16.msra.mxu0 0
      %624 = vmatprep.subr.bf16.mxu0 0
      %625 = vmatpush1.bf16.msra.mxu0 0
      %626 = vmatprep.subr.bf16.mxu0 0
      %627 = vmatpush1.bf16.msra.mxu0 0
      %628 = vmatprep.subr.bf16.mxu0 0
      %629 = vmatpush1.bf16.msra.mxu0 0
      %630 = vmatprep.subr.bf16.mxu0 0
      %631 = vmatpush1.bf16.msra.mxu0 0
      %632 = vmatprep.subr.bf16.mxu0 0
      %633 = vmatpush1.bf16.msra.mxu0 0
      %634 = vmatprep.subr.bf16.mxu0 0
      %635 = vmatpush1.bf16.msra.mxu0 0
      %636 = vmatprep.subr.bf16.mxu0 0
      %637 = vmatpush1.bf16.msra.mxu0 0
      %638 = vmatprep.subr.bf16.mxu0 0
      %639 = vmatpush1.bf16.msra.mxu0 0
      %640 = vmatprep.mubr.bf16.mxu0 0
      %641 = vmatmul.mubr.bf16.gmra.mrb[0].mxu0 %v603
      %v642 = vpop.f32.mrb[0].mxu0
      %v643 = vadd.f32 %v466, %v642
      %v644 = vpop.f32.mrb[0].mxu0
      %v645 = vpop.f32.mrb[0].mxu0
      %v646 = vadd.f32 %v469, %v645
      %v647 = vpop.f32.mrb[0].mxu0
      %648 = vmatprep.mubr.bf16.mxu0 0
      %649 = vmatmul.mubr.bf16.gmra.mrb[0].mxu0 %v380
      %v650 = vpop.f32.mrb[0].mxu0
      %v651 = vadd.f32 %v474, %v650
      %v652 = vpop.f32.mrb[0].mxu0
      %v653 = vpop.f32.mrb[0].mxu0
      %v654 = vadd.f32 %v477, %v653
      %v655 = vpop.f32.mrb[0].mxu0
      %656 = vmatprep.mubr.bf16.mxu0 0
      %657 = vmatmul.mubr.bf16.gmra.mrb[0].mxu0 %v383
      %v658 = vpop.f32.mrb[0].mxu0
      %v659 = vadd.f32 %v482, %v658
      %v660 = vpop.f32.mrb[0].mxu0
      %v661 = vpop.f32.mrb[0].mxu0
      %v662 = vadd.f32 %v485, %v661
      %v663 = vpop.f32.mrb[0].mxu0
      %664 = vmatprep.mubr.bf16.mxu0 0
      %665 = vmatmul.mubr.bf16.gmra.mrb[0].mxu0 %v386
      %v666 = vpop.f32.mrb[0].mxu0
      %v667 = vadd.f32 %v490, %v666
      %v668 = vpop.f32.mrb[0].mxu0
      %v669 = vpop.f32.mrb[0].mxu0
      %v670 = vadd.f32 %v493, %v669
      %v671 = vpop.f32.mrb[0].mxu0
      %672 = vmatprep.mubr.bf16.mxu0 0
      %673 = vmatmul.mubr.bf16.gmra.mrb[0].mxu0 %v389
      %v674 = vpop.f32.mrb[0].mxu0
      %v675 = vadd.f32 %v498, %v674
      %v676 = vpop.f32.mrb[0].mxu0
      %v677 = vpop.f32.mrb[0].mxu0
      %v678 = vadd.f32 %v501, %v677
      %v679 = vpop.f32.mrb[0].mxu0
      %680 = vmatprep.mubr.bf16.mxu0 0
      %681 = vmatmul.mubr.bf16.gmra.mrb[0].mxu0 %v392
      %v682 = vpop.f32.mrb[0].mxu0
      %v683 = vadd.f32 %v506, %v682
      %v684 = vpop.f32.mrb[0].mxu0
      %v685 = vpop.f32.mrb[0].mxu0
      %v686 = vadd.f32 %v509, %v685
      %v687 = vpop.f32.mrb[0].mxu0
      %688 = vmatprep.mubr.bf16.mxu0 0
      %689 = vmatmul.mubr.bf16.gmra.mrb[0].mxu0 %v395
      %v690 = vpop.f32.mrb[0].mxu0
      %v691 = vadd.f32 %v514, %v690
      %v692 = vpop.f32.mrb[0].mxu0
      %v693 = vpop.f32.mrb[0].mxu0
      %v694 = vadd.f32 %v517, %v693
      %v695 = vpop.f32.mrb[0].mxu0
      %696 = vmatprep.mubr.bf16.mxu0 0
      %697 = vmatmul.mubr.bf16.gmra.mrb[0].mxu0 %v398
      %v698 = vpop.f32.mrb[0].mxu0
      %v699 = vadd.f32 %v522, %v698
      %v700 = vpop.f32.mrb[0].mxu0
      %v701 = vpop.f32.mrb[0].mxu0
      %v702 = vadd.f32 %v525, %v701
      %v703 = vpop.f32.mrb[0].mxu0
      %704 = vmatprep.mubr.bf16.mxu0 0
      %705 = vmatmul.mubr.bf16.gmra.mrb[0].mxu0 %v401
      %v706 = vpop.f32.mrb[0].mxu0
      %v707 = vadd.f32 %v530, %v706
      %v708 = vpop.f32.mrb[0].mxu0
      %v709 = vpop.f32.mrb[0].mxu0
      %v710 = vadd.f32 %v533, %v709
      %v711 = vpop.f32.mrb[0].mxu0
      %712 = vmatprep.mubr.bf16.mxu0 0
      %713 = vmatmul.mubr.bf16.gmra.mrb[0].mxu0 %v404
      %v714 = vpop.f32.mrb[0].mxu0
      %v715 = vadd.f32 %v538, %v714
      %v716 = vpop.f32.mrb[0].mxu0
      %v717 = vpop.f32.mrb[0].mxu0
      %v718 = vadd.f32 %v541, %v717
      %v719 = vpop.f32.mrb[0].mxu0
      %720 = vmatprep.mubr.bf16.mxu0 0
      %721 = vmatmul.mubr.bf16.gmra.mrb[0].mxu0 %v407
      %v722 = vpop.f32.mrb[0].mxu0
      %v723 = vadd.f32 %v546, %v722
      %v724 = vpop.f32.mrb[0].mxu0
      %v725 = vpop.f32.mrb[0].mxu0
      %v726 = vadd.f32 %v549, %v725
      %v727 = vpop.f32.mrb[0].mxu0
      %728 = vmatprep.mubr.bf16.mxu0 0
      %729 = vmatmul.mubr.bf16.gmra.mrb[0].mxu0 %v410
      %v730 = vpop.f32.mrb[0].mxu0
      %v731 = vadd.f32 %v554, %v730
      %v732 = vpop.f32.mrb[0].mxu0
      %v733 = vpop.f32.mrb[0].mxu0
      %v734 = vadd.f32 %v557, %v733
      %v735 = vpop.f32.mrb[0].mxu0
      %736 = vmatprep.mubr.bf16.mxu0 0
      %737 = vmatmul.mubr.bf16.gmra.mrb[0].mxu0 %v413
      %v738 = vpop.f32.mrb[0].mxu0
      %v739 = vadd.f32 %v562, %v738
      %v740 = vpop.f32.mrb[0].mxu0
      %v741 = vpop.f32.mrb[0].mxu0
      %v742 = vadd.f32 %v565, %v741
      %v743 = vpop.f32.mrb[0].mxu0
      %744 = vmatprep.mubr.bf16.mxu0 0
      %745 = vmatmul.mubr.bf16.gmra.mrb[0].mxu0 %v416
      %v746 = vpop.f32.mrb[0].mxu0
      %v747 = vadd.f32 %v570, %v746
      %v748 = vpop.f32.mrb[0].mxu0
      %v749 = vpop.f32.mrb[0].mxu0
      %v750 = vadd.f32 %v573, %v749
      %v751 = vpop.f32.mrb[0].mxu0
      %752 = vmatprep.mubr.bf16.mxu0 0
      %753 = vmatmul.mubr.bf16.gmra.mrb[0].mxu0 %v419
      %v754 = vpop.f32.mrb[0].mxu0
      %v755 = vadd.f32 %v578, %v754
      %v756 = vpop.f32.mrb[0].mxu0
      %v757 = vpop.f32.mrb[0].mxu0
      %v758 = vadd.f32 %v581, %v757
      %v759 = vpop.f32.mrb[0].mxu0
      %760 = vmatprep.mubr.bf16.mxu0 0
      %761 = vmatmul.mubr.bf16.gmra.mrb[0].mxu0 %v422
      %v762 = vpop.f32.mrb[0].mxu0
      %v763 = vadd.f32 %v586, %v762
      %v764 = vpop.f32.mrb[0].mxu0
      %v765 = vpop.f32.mrb[0].mxu0
      %v766 = vadd.f32 %v589, %v765
      %v767 = vpop.f32.mrb[0].mxu0
      %768 = vdwg.mxu0
      %v769 = vld [vmem:[%s233 + $0x10] sm:$0xf]
      %v770 = vld [vmem:[%s233 + $0x14] sm:$0xf]
      %v771 = vld [vmem:[%s233 + $0x18] sm:$0xf]
      %v772 = vld [vmem:[%s233 + $0x1c] sm:$0xf]
      %v773 = vld [vmem:[%s233 + $0x20] sm:$0xf]
      %v774 = vld [vmem:[%s233 + $0x24] sm:$0xf]
      %v775 = vld [vmem:[%s233 + $0x28] sm:$0xf]
      %v776 = vld [vmem:[%s233 + $0x2c] sm:$0xf]
      %v777 = vld [vmem:[%s233 + $0x30] sm:$0xf]
      %v778 = vld [vmem:[%s233 + $0x34] sm:$0xf]
      %v779 = vld [vmem:[%s233 + $0x38] sm:$0xf]
      %v780 = vld [vmem:[%s233 + $0x3c] sm:$0xf]
      %v781 = vld [vmem:[%s233 + $0x40] sm:$0xf]
      %v782 = vld [vmem:[%s233 + $0x44] sm:$0xf]
      %v783 = vld [vmem:[%s233 + $0x48] sm:$0xf]
      %v784 = vld [vmem:[%s233 + $0x4c] sm:$0xf]
      %v785 = vld [vmem:[%s233 + $0x50] sm:$0xf]
      %v786 = vld [vmem:[%s233 + $0x54] sm:$0xf]
      %v787 = vld [vmem:[%s233 + $0x58] sm:$0xf]
      %v788 = vld [vmem:[%s233 + $0x5c] sm:$0xf]
      %v789 = vld [vmem:[%s233 + $0x60] sm:$0xf]
      %v790 = vld [vmem:[%s233 + $0x64] sm:$0xf]
      %v791 = vld [vmem:[%s233 + $0x68] sm:$0xf]
      %v792 = vld [vmem:[%s233 + $0x6c] sm:$0xf]
      %v793 = vld [vmem:[%s233 + $0x70] sm:$0xf]
      %v794 = vld [vmem:[%s233 + $0x74] sm:$0xf]
      %v795 = vld [vmem:[%s233 + $0x78] sm:$0xf]
      %v796 = vld [vmem:[%s233 + $0x7c] sm:$0xf]
      %v797 = vld [vmem:[%s233 + $0x80] sm:$0xf]
      %v798 = vld [vmem:[%s233 + $0x84] sm:$0xf]
      %v799 = vld [vmem:[%s233 + $0x88] sm:$0xf]
      %v800 = vld [vmem:[%s233 + $0x8c] sm:$0xf]
      %s801 = scalar_lea.vmem %s237, 16
      %v802 = vld [vmem:[%s801] sm:$0xf]
      %v803 = vld [vmem:[%s801 + $0x4] sm:$0x3]
      %v836 = vunpack.c.l.b16 %v769
      %v837 = vunpack.c.l.b16 %v770
      %v838 = vunpack.c.l.b16 %v771
      %v839 = vunpack.c.l.b16 %v772
      %v840 = vunpack.c.l.b16 %v773
      %v841 = vunpack.c.l.b16 %v774
      %v842 = vunpack.c.l.b16 %v775
      %v843 = vunpack.c.l.b16 %v776
      %v844 = vunpack.c.l.b16 %v777
      %v845 = vunpack.c.l.b16 %v778
      %v846 = vunpack.c.l.b16 %v779
      %v847 = vunpack.c.l.b16 %v780
      %v848 = vunpack.c.l.b16 %v781
      %v849 = vunpack.c.l.b16 %v782
      %v850 = vunpack.c.l.b16 %v783
      %v851 = vunpack.c.l.b16 %v784
      %v852 = vunpack.c.l.b16 %v785
      %v853 = vunpack.c.l.b16 %v786
      %v854 = vunpack.c.l.b16 %v787
      %v855 = vunpack.c.l.b16 %v788
      %v856 = vunpack.c.l.b16 %v789
      %v857 = vunpack.c.l.b16 %v790
      %v858 = vunpack.c.l.b16 %v791
      %v859 = vunpack.c.l.b16 %v792
      %v860 = vunpack.c.l.b16 %v793
      %v861 = vunpack.c.l.b16 %v794
      %v862 = vunpack.c.l.b16 %v795
      %v863 = vunpack.c.l.b16 %v796
      %v864 = vunpack.c.l.b16 %v797
      %v865 = vunpack.c.l.b16 %v798
      %v866 = vunpack.c.l.b16 %v799
      %v867 = vunpack.c.l.b16 %v800
      %v868 = vpack.c.b16 %v837, %v836
      %v869 = vpack.c.b16 %v839, %v838
      %v870 = vpack.c.b16 %v841, %v840
      %v871 = vpack.c.b16 %v843, %v842
      %v872 = vpack.c.b16 %v845, %v844
      %v873 = vpack.c.b16 %v847, %v846
      %v874 = vpack.c.b16 %v849, %v848
      %v875 = vpack.c.b16 %v851, %v850
      %v876 = vpack.c.b16 %v853, %v852
      %v877 = vpack.c.b16 %v855, %v854
      %v878 = vpack.c.b16 %v857, %v856
      %v879 = vpack.c.b16 %v859, %v858
      %v880 = vpack.c.b16 %v861, %v860
      %v881 = vpack.c.b16 %v863, %v862
      %v882 = vpack.c.b16 %v865, %v864
      %v883 = vpack.c.b16 %v867, %v866
      %v886 = vunpack.c.l.b16 %v802
      %v887 = vunpack.c.l.b16 %v803
      %v888 = vpack.c.b16 %v887, %v886
      %v890 = vsel %vm378, %v868, 0
      %v893 = vsel %vm378, %v869, 0
      %v896 = vsel %vm378, %v870, 0
      %v899 = vsel %vm378, %v871, 0
      %v902 = vsel %vm378, %v872, 0
      %v905 = vsel %vm378, %v873, 0
      %v908 = vsel %vm378, %v874, 0
      %v911 = vsel %vm378, %v875, 0
      %v914 = vsel %vm378, %v876, 0
      %v917 = vsel %vm378, %v877, 0
      %v920 = vsel %vm378, %v878, 0
      %v923 = vsel %vm378, %v879, 0
      %v926 = vsel %vm378, %v880, 0
      %v929 = vsel %vm378, %v881, 0
      %v932 = vsel %vm378, %v882, 0
      %v935 = vsel %vm378, %v883, 0
      %v938 = vsel %vm427, %v888, 0
      %940 = vmatprep.subr.bf16.mxu0 0
      %941 = vmatpush1.bf16.msra.mxu0 %v938
      %942 = vmatprep.subr.bf16.mxu0 0
      %943 = vmatpush1.bf16.msra.mxu0 0
      %944 = vmatprep.subr.bf16.mxu0 0
      %945 = vmatpush1.bf16.msra.mxu0 0
      %946 = vmatprep.subr.bf16.mxu0 0
      %947 = vmatpush1.bf16.msra.mxu0 0
      %948 = vmatprep.subr.bf16.mxu0 0
      %949 = vmatpush1.bf16.msra.mxu0 0
      %950 = vmatprep.subr.bf16.mxu0 0
      %951 = vmatpush1.bf16.msra.mxu0 0
      %952 = vmatprep.subr.bf16.mxu0 0
      %953 = vmatpush1.bf16.msra.mxu0 0
      %954 = vmatprep.subr.bf16.mxu0 0
      %955 = vmatpush1.bf16.msra.mxu0 0
      %956 = vmatprep.subr.bf16.mxu0 0
      %957 = vmatpush1.bf16.msra.mxu0 0
      %958 = vmatprep.subr.bf16.mxu0 0
      %959 = vmatpush1.bf16.msra.mxu0 0
      %960 = vmatprep.subr.bf16.mxu0 0
      %961 = vmatpush1.bf16.msra.mxu0 0
      %962 = vmatprep.subr.bf16.mxu0 0
      %963 = vmatpush1.bf16.msra.mxu0 0
      %964 = vmatprep.subr.bf16.mxu0 0
      %965 = vmatpush1.bf16.msra.mxu0 0
      %966 = vmatprep.subr.bf16.mxu0 0
      %967 = vmatpush1.bf16.msra.mxu0 0
      %968 = vmatprep.subr.bf16.mxu0 0
      %969 = vmatpush1.bf16.msra.mxu0 0
      %970 = vmatprep.subr.bf16.mxu0 0
      %971 = vmatpush1.bf16.msra.mxu0 0
      %972 = vmatprep.mubr.bf16.mxu0 0
      %973 = vmatmul.mubr.bf16.gmra.mrb[0].mxu0 %v890
      %v974 = vpop.f32.mrb[0].mxu0
      %v975 = vadd.f32 0.0, %v974
      %v976 = vpop.f32.mrb[0].mxu0
      %v977 = vpop.f32.mrb[0].mxu0
      %v978 = vadd.f32 0.0, %v977
      %v979 = vpop.f32.mrb[0].mxu0
      %980 = vmatprep.mubr.bf16.mxu0 0
      %981 = vmatmul.mubr.bf16.gmra.mrb[0].mxu0 %v893
      %v982 = vpop.f32.mrb[0].mxu0
      %v983 = vadd.f32 0.0, %v982
      %v984 = vpop.f32.mrb[0].mxu0
      %v985 = vpop.f32.mrb[0].mxu0
      %v986 = vadd.f32 0.0, %v985
      %v987 = vpop.f32.mrb[0].mxu0
      %988 = vmatprep.mubr.bf16.mxu0 0
      %989 = vmatmul.mubr.bf16.gmra.mrb[0].mxu0 %v896
      %v990 = vpop.f32.mrb[0].mxu0
      %v991 = vadd.f32 0.0, %v990
      %v992 = vpop.f32.mrb[0].mxu0
      %v993 = vpop.f32.mrb[0].mxu0
      %v994 = vadd.f32 0.0, %v993
      %v995 = vpop.f32.mrb[0].mxu0
      %996 = vmatprep.mubr.bf16.mxu0 0
      %997 = vmatmul.mubr.bf16.gmra.mrb[0].mxu0 %v899
      %v998 = vpop.f32.mrb[0].mxu0
      %v999 = vadd.f32 0.0, %v998
      %v1000 = vpop.f32.mrb[0].mxu0
      %v1001 = vpop.f32.mrb[0].mxu0
      %v1002 = vadd.f32 0.0, %v1001
      %v1003 = vpop.f32.mrb[0].mxu0
      %1004 = vmatprep.mubr.bf16.mxu0 0
      %1005 = vmatmul.mubr.bf16.gmra.mrb[0].mxu0 %v902
      %v1006 = vpop.f32.mrb[0].mxu0
      %v1007 = vadd.f32 0.0, %v1006
      %v1008 = vpop.f32.mrb[0].mxu0
      %v1009 = vpop.f32.mrb[0].mxu0
      %v1010 = vadd.f32 0.0, %v1009
      %v1011 = vpop.f32.mrb[0].mxu0
      %1012 = vmatprep.mubr.bf16.mxu0 0
      %1013 = vmatmul.mubr.bf16.gmra.mrb[0].mxu0 %v905
      %v1014 = vpop.f32.mrb[0].mxu0
      %v1015 = vadd.f32 0.0, %v1014
      %v1016 = vpop.f32.mrb[0].mxu0
      %v1017 = vpop.f32.mrb[0].mxu0
      %v1018 = vadd.f32 0.0, %v1017
      %v1019 = vpop.f32.mrb[0].mxu0
      %1020 = vmatprep.mubr.bf16.mxu0 0
      %1021 = vmatmul.mubr.bf16.gmra.mrb[0].mxu0 %v908
      %v1022 = vpop.f32.mrb[0].mxu0
      %v1023 = vadd.f32 0.0, %v1022
      %v1024 = vpop.f32.mrb[0].mxu0
      %v1025 = vpop.f32.mrb[0].mxu0
      %v1026 = vadd.f32 0.0, %v1025
      %v1027 = vpop.f32.mrb[0].mxu0
      %1028 = vmatprep.mubr.bf16.mxu0 0
      %1029 = vmatmul.mubr.bf16.gmra.mrb[0].mxu0 %v911
      %v1030 = vpop.f32.mrb[0].mxu0
      %v1031 = vadd.f32 0.0, %v1030
      %v1032 = vpop.f32.mrb[0].mxu0
      %v1033 = vpop.f32.mrb[0].mxu0
      %v1034 = vadd.f32 0.0, %v1033
      %v1035 = vpop.f32.mrb[0].mxu0
      %1036 = vmatprep.mubr.bf16.mxu0 0
      %1037 = vmatmul.mubr.bf16.gmra.mrb[0].mxu0 %v914
      %v1038 = vpop.f32.mrb[0].mxu0
      %v1039 = vadd.f32 0.0, %v1038
      %v1040 = vpop.f32.mrb[0].mxu0
      %v1041 = vpop.f32.mrb[0].mxu0
      %v1042 = vadd.f32 0.0, %v1041
      %v1043 = vpop.f32.mrb[0].mxu0
      %1044 = vmatprep.mubr.bf16.mxu0 0
      %1045 = vmatmul.mubr.bf16.gmra.mrb[0].mxu0 %v917
      %v1046 = vpop.f32.mrb[0].mxu0
      %v1047 = vadd.f32 0.0, %v1046
      %v1048 = vpop.f32.mrb[0].mxu0
      %v1049 = vpop.f32.mrb[0].mxu0
      %v1050 = vadd.f32 0.0, %v1049
      %v1051 = vpop.f32.mrb[0].mxu0
      %1052 = vmatprep.mubr.bf16.mxu0 0
      %1053 = vmatmul.mubr.bf16.gmra.mrb[0].mxu0 %v920
      %v1054 = vpop.f32.mrb[0].mxu0
      %v1055 = vadd.f32 0.0, %v1054
      %v1056 = vpop.f32.mrb[0].mxu0
      %v1057 = vpop.f32.mrb[0].mxu0
      %v1058 = vadd.f32 0.0, %v1057
      %v1059 = vpop.f32.mrb[0].mxu0
      %1060 = vmatprep.mubr.bf16.mxu0 0
      %1061 = vmatmul.mubr.bf16.gmra.mrb[0].mxu0 %v923
      %v1062 = vpop.f32.mrb[0].mxu0
      %v1063 = vadd.f32 0.0, %v1062
      %v1064 = vpop.f32.mrb[0].mxu0
      %v1065 = vpop.f32.mrb[0].mxu0
      %v1066 = vadd.f32 0.0, %v1065
      %v1067 = vpop.f32.mrb[0].mxu0
      %1068 = vmatprep.mubr.bf16.mxu0 0
      %1069 = vmatmul.mubr.bf16.gmra.mrb[0].mxu0 %v926
      %v1070 = vpop.f32.mrb[0].mxu0
      %v1071 = vadd.f32 0.0, %v1070
      %v1072 = vpop.f32.mrb[0].mxu0
      %v1073 = vpop.f32.mrb[0].mxu0
      %v1074 = vadd.f32 0.0, %v1073
      %v1075 = vpop.f32.mrb[0].mxu0
      %1076 = vmatprep.mubr.bf16.mxu0 0
      %1077 = vmatmul.mubr.bf16.gmra.mrb[0].mxu0 %v929
      %v1078 = vpop.f32.mrb[0].mxu0
      %v1079 = vadd.f32 0.0, %v1078
      %v1080 = vpop.f32.mrb[0].mxu0
      %v1081 = vpop.f32.mrb[0].mxu0
      %v1082 = vadd.f32 0.0, %v1081
      %v1083 = vpop.f32.mrb[0].mxu0
      %1084 = vmatprep.mubr.bf16.mxu0 0
      %1085 = vmatmul.mubr.bf16.gmra.mrb[0].mxu0 %v932
      %v1086 = vpop.f32.mrb[0].mxu0
      %v1087 = vadd.f32 0.0, %v1086
      %v1088 = vpop.f32.mrb[0].mxu0
      %v1089 = vpop.f32.mrb[0].mxu0
      %v1090 = vadd.f32 0.0, %v1089
      %v1091 = vpop.f32.mrb[0].mxu0
      %1092 = vmatprep.mubr.bf16.mxu0 0
      %1093 = vmatmul.mubr.bf16.gmra.mrb[0].mxu0 %v935
      %v1094 = vpop.f32.mrb[0].mxu0
      %v1095 = vadd.f32 0.0, %v1094
      %v1096 = vpop.f32.mrb[0].mxu0
      %v1097 = vpop.f32.mrb[0].mxu0
      %v1098 = vadd.f32 0.0, %v1097
      %v1099 = vpop.f32.mrb[0].mxu0
      %1100 = vdwg.mxu0
      %v1101 = vadd.f32 %v643, %v975
      %v1102 = vadd.f32 %v646, %v978
      %v1103 = vadd.f32 %v651, %v983
      %v1104 = vadd.f32 %v654, %v986
      %v1105 = vadd.f32 %v659, %v991
      %v1106 = vadd.f32 %v662, %v994
      %v1107 = vadd.f32 %v667, %v999
      %v1108 = vadd.f32 %v670, %v1002
      %v1109 = vadd.f32 %v675, %v1007
      %v1110 = vadd.f32 %v678, %v1010
      %v1111 = vadd.f32 %v683, %v1015
      %v1112 = vadd.f32 %v686, %v1018
      %v1113 = vadd.f32 %v691, %v1023
      %v1114 = vadd.f32 %v694, %v1026
      %v1115 = vadd.f32 %v699, %v1031
      %v1116 = vadd.f32 %v702, %v1034
      %v1117 = vadd.f32 %v707, %v1039
      %v1118 = vadd.f32 %v710, %v1042
      %v1119 = vadd.f32 %v715, %v1047
      %v1120 = vadd.f32 %v718, %v1050
      %v1121 = vadd.f32 %v723, %v1055
      %v1122 = vadd.f32 %v726, %v1058
      %v1123 = vadd.f32 %v731, %v1063
      %v1124 = vadd.f32 %v734, %v1066
      %v1125 = vadd.f32 %v739, %v1071
      %v1126 = vadd.f32 %v742, %v1074
      %v1127 = vadd.f32 %v747, %v1079
      %v1128 = vadd.f32 %v750, %v1082
      %v1129 = vadd.f32 %v755, %v1087
      %v1130 = vadd.f32 %v758, %v1090
      %v1131 = vadd.f32 %v763, %v1095
      %v1132 = vadd.f32 %v766, %v1098
      %v1133 = vld [vmem:[%s240] sm:$0x1]
      %v1135 = vlaneseq
      %v1136 = vshrl.u32 %v1135, 7
      %v1137 = vsub.s32 0, %v1136
      %v1138 = vrot.slane %v1133, %v1137
      %v1140 = vadd.f32 %v1101, %v1138
      %v1141 = vadd.f32 %v1102, %v1138
      %v1142 = vadd.f32 %v1103, %v1138
      %v1143 = vadd.f32 %v1104, %v1138
      %v1144 = vadd.f32 %v1105, %v1138
      %v1145 = vadd.f32 %v1106, %v1138
      %v1146 = vadd.f32 %v1107, %v1138
      %v1147 = vadd.f32 %v1108, %v1138
      %v1148 = vadd.f32 %v1109, %v1138
      %v1149 = vadd.f32 %v1110, %v1138
      %v1150 = vadd.f32 %v1111, %v1138
      %v1151 = vadd.f32 %v1112, %v1138
      %v1152 = vadd.f32 %v1113, %v1138
      %v1153 = vadd.f32 %v1114, %v1138
      %v1154 = vadd.f32 %v1115, %v1138
      %v1155 = vadd.f32 %v1116, %v1138
      %v1156 = vadd.f32 %v1117, %v1138
      %v1157 = vadd.f32 %v1118, %v1138
      %v1158 = vadd.f32 %v1119, %v1138
      %v1159 = vadd.f32 %v1120, %v1138
      %v1160 = vadd.f32 %v1121, %v1138
      %v1161 = vadd.f32 %v1122, %v1138
      %v1162 = vadd.f32 %v1123, %v1138
      %v1163 = vadd.f32 %v1124, %v1138
      %v1164 = vadd.f32 %v1125, %v1138
      %v1165 = vadd.f32 %v1126, %v1138
      %v1166 = vadd.f32 %v1127, %v1138
      %v1167 = vadd.f32 %v1128, %v1138
      %v1168 = vadd.f32 %v1129, %v1138
      %v1169 = vadd.f32 %v1130, %v1138
      %v1170 = vadd.f32 %v1131, %v1138
      %v1171 = vadd.f32 %v1132, %v1138
      %vm1172 = vcmask 64512
      %1173 = vst.msk [vmem:[%s252] sm:$0xff] %vm1172, %v1140
      %1174 = vst.msk [vmem:[%s252 + $0x8] sm:$0xff] %vm1172, %v1141
      %1175 = vst.msk [vmem:[%s252 + $0x10] sm:$0xff] %vm1172, %v1142
      %1176 = vst.msk [vmem:[%s252 + $0x18] sm:$0xff] %vm1172, %v1143
      %1177 = vst.msk [vmem:[%s252 + $0x20] sm:$0xff] %vm1172, %v1144
      %1178 = vst.msk [vmem:[%s252 + $0x28] sm:$0xff] %vm1172, %v1145
      %1179 = vst.msk [vmem:[%s252 + $0x30] sm:$0xff] %vm1172, %v1146
      %1180 = vst.msk [vmem:[%s252 + $0x38] sm:$0xff] %vm1172, %v1147
      %1181 = vst.msk [vmem:[%s252 + $0x40] sm:$0xff] %vm1172, %v1148
      %1182 = vst.msk [vmem:[%s252 + $0x48] sm:$0xff] %vm1172, %v1149
      %1183 = vst.msk [vmem:[%s252 + $0x50] sm:$0xff] %vm1172, %v1150
      %1184 = vst.msk [vmem:[%s252 + $0x58] sm:$0xff] %vm1172, %v1151
      %1185 = vst.msk [vmem:[%s252 + $0x60] sm:$0xff] %vm1172, %v1152
      %1186 = vst.msk [vmem:[%s252 + $0x68] sm:$0xff] %vm1172, %v1153
      %1187 = vst.msk [vmem:[%s252 + $0x70] sm:$0xff] %vm1172, %v1154
      %1188 = vst.msk [vmem:[%s252 + $0x78] sm:$0xff] %vm1172, %v1155
      %1189 = vst.msk [vmem:[%s252 + $0x80] sm:$0xff] %vm1172, %v1156
      %1190 = vst.msk [vmem:[%s252 + $0x88] sm:$0xff] %vm1172, %v1157
      %1191 = vst.msk [vmem:[%s252 + $0x90] sm:$0xff] %vm1172, %v1158
      %1192 = vst.msk [vmem:[%s252 + $0x98] sm:$0xff] %vm1172, %v1159
      %1193 = vst.msk [vmem:[%s252 + $0xa0] sm:$0xff] %vm1172, %v1160
      %1194 = vst.msk [vmem:[%s252 + $0xa8] sm:$0xff] %vm1172, %v1161
      %1195 = vst.msk [vmem:[%s252 + $0xb0] sm:$0xff] %vm1172, %v1162
      %1196 = vst.msk [vmem:[%s252 + $0xb8] sm:$0xff] %vm1172, %v1163
      %1197 = vst.msk [vmem:[%s252 + $0xc0] sm:$0xff] %vm1172, %v1164
      %1198 = vst.msk [vmem:[%s252 + $0xc8] sm:$0xff] %vm1172, %v1165
      %1199 = vst.msk [vmem:[%s252 + $0xd0] sm:$0xff] %vm1172, %v1166
      %1200 = vst.msk [vmem:[%s252 + $0xd8] sm:$0xff] %vm1172, %v1167
      %1201 = vst.msk [vmem:[%s252 + $0xe0] sm:$0xff] %vm1172, %v1168
      %1202 = vst.msk [vmem:[%s252 + $0xe8] sm:$0xff] %vm1172, %v1169
      %1203 = vst.msk [vmem:[%s252 + $0xf0] sm:$0xff] %vm1172, %v1170
      %1204 = vst.msk [vmem:[%s252 + $0xf8] sm:$0xff] %vm1172, %v1171
      %p1205 = scmp.lt.s32.totalorder %s19, 1
      %s1206 = scalar_select %p1205, %s19, 1
      %p1207 = scmp.lt.s32.totalorder %s20, 0
      %s1208 = scalar_select %p1207, %s20, 0
      %p1209 = scmp.lt.s32.totalorder %s21, 0
      %s1210 = scalar_select %p1209, %s21, 0
      %s1211 = smul.addr %s1208, 32
      %s1212 = sadd.s32 %s1210, %s1211
      %s1213 = smul.addr %s1206, 32
      %s1214 = sadd.s32 %s1212, %s1213
      %s1215 = smul.addr %s1214, 8
      %s1216 = scalar_lea.vmem %s3, %s1215
      // Predicated region
      $region33: #{tpu_custom_call.1} parent=31 // pred_check
        %p1217 = pneg %p135
      $region34: #{tpu_custom_call.1} parent=31 // pred_check_branch
        %1219 = sbr.rel (%p1217) target = $region36
      $region35: #{tpu_custom_call.1} parent=31 // pred_region
        _
      $region36: #{tpu_custom_call.1} parent=31 // pred_fallthru
        _
    $region32: #{tpu_custom_call.1} parent=5 // pred_fallthru
      _
    %p1220 = scmp.le.s32.totalorder 2, %s9
    // Predicated region
    $region37: #{tpu_custom_call.1} parent=5 // pred_check
      %p1221 = pneg %p1220
    $region38: #{tpu_custom_call.1} parent=5 // pred_check_branch
      %1223 = sbr.rel (%p1221) target = $region40
    $region39: #{tpu_custom_call.1} parent=5 // pred_region
      %s1224 = ssub.s32 %s9, 2
      // Predicated region
      $region41: #{tpu_custom_call.1} parent=39 // pred_check
        %p1225 = pneg %p141
      $region42: #{tpu_custom_call.1} parent=39 // pred_check_branch
        %1227 = sbr.rel (%p1225) target = $region44
      $region43: #{tpu_custom_call.1} parent=39 // pred_region
        %p1228 = scmp.lt.s32.totalorder %s22, 1
        %s1229 = scalar_select %p1228, %s22, 1
        %p1230 = scmp.lt.s32.totalorder %s23, 0
        %s1231 = scalar_select %p1230, %s23, 0
        %p1232 = scmp.lt.s32.totalorder %s24, 0
        %s1233 = scalar_select %p1232, %s24, 0
        %s1234 = smul.addr %s1231, 32
        %s1235 = sadd.s32 %s1233, %s1234
        %s1236 = smul.addr %s1229, 32
        %s1237 = sadd.s32 %s1235, %s1236
        %s1238 = smul.addr %s1237, 8
        %s1239 = scalar_lea.vmem %s3, %s1238
      $region44: #{tpu_custom_call.1} parent=39 // pred_fallthru
        _
    $region40: #{tpu_custom_call.1} parent=5 // pred_fallthru
      _
  $region6: #{tpu_custom_call.1} parent=0 // loop_footer
    %s13 = sadd.s32 1, %s9
  $region7: #{tpu_custom_call.1} parent=0 // loop_footer_branch
    %8 = sbr.rel target = $region3
  $region8: #{tpu_custom_call.1} parent=0 // loop_exit
    _

</llo_original>
